<compile_context>
chip_gen: v7x
topology: tpu7x:2x2x1
jax: 0.10.0
libtpu: 0.0.40
codegen_flags: <defaults>
</compile_context>

<pallas_src>
import math

import jax
import jax.numpy as jnp
from jax.experimental import pallas as pl
from jax.experimental.pallas import tpu as pltpu


# ---------------------------------------------------------------------------
# Parameter construction (FixedEmbedding sinusoidal tables, deterministic)
# ---------------------------------------------------------------------------
def fixed_embedding_table(c_in: int, d_model: int) -> jnp.ndarray:
    assert d_model % 2 == 0, "FixedEmbedding requires an even d_model"
    position = jnp.arange(c_in, dtype=jnp.float32)[:, None]
    div_term = jnp.exp(
        jnp.arange(0, d_model, 2, dtype=jnp.float32) * -(math.log(10000.0) / d_model)
    )
    w = jnp.zeros((c_in, d_model), dtype=jnp.float32)
    w = w.at[:, 0::2].set(jnp.sin(position * div_term))
    w = w.at[:, 1::2].set(jnp.cos(position * div_term))
    return w


def _round_up(x: int, m: int) -> int:
    return ((x + m - 1) // m) * m


# ---------------------------------------------------------------------------
# Pallas kernel: boolean multi-hot -> single MXU pass -> lane-dense store
# ---------------------------------------------------------------------------
def _temporal_kernel(idx_ref, w_ref, out_ref):
    idx = idx_ref[...]          # (G, C) int32, pre-offset rows of the fused table
    w = w_ref[...]              # (K, D_out) fused (block-diagonal) table, VMEM resident
    G, C = idx.shape
    K = w.shape[0]

    # One iota constant; C disjoint one-hots combined with OR; a single cast.
    iota = jax.lax.broadcasted_iota(jnp.int32, (G, K), 1)
    sel = iota == idx[:, 0][:, None]
    for c in range(1, C):                      # static unroll, C = T * k (<= ~40)
        sel = jnp.logical_or(sel, iota == idx[:, c][:, None])
    mh = sel.astype(w.dtype)                   # 0/1 is exact in bf16 as well

    # One MXU pass (G, K) @ (K, D_out), written straight to the output block.
    out_ref[...] = jnp.dot(mh, w, preferred_element_type=jnp.float32).astype(out_ref.dtype)


# ---------------------------------------------------------------------------
# Wrapper (table fusion, lane-dense packing, index offsetting, tiling)
# ---------------------------------------------------------------------------
class TemporalEmbeddingPallas:
    def __init__(self, d_model: int, embed_type: str = "fixed", freq: str = "h",
                 table_dtype=jnp.float32, out_dtype=None):
        assert embed_type == "fixed"           # synthetic FixedEmbedding tables
        assert d_model % 2 == 0
        minute_size, hour_size, weekday_size, day_size, month_size = 4, 24, 7, 32, 13
        self.d_model = d_model
        self.freq = freq
        self.table_dtype = jnp.dtype(table_dtype)
        self.out_dtype = jnp.dtype(out_dtype) if out_dtype is not None else self.table_dtype

        # (column in x, table) pairs, matching the PyTorch forward
        self.cols_tables = [
            (3, fixed_embedding_table(hour_size, d_model)),      # hour   : x[:,:,3]
            (2, fixed_embedding_table(weekday_size, d_model)),   # weekday: x[:,:,2]
            (1, fixed_embedding_table(day_size, d_model)),       # day    : x[:,:,1]
            (0, fixed_embedding_table(month_size, d_model)),     # month  : x[:,:,0]
        ]
        if freq == "t":
            self.cols_tables.append(
                (4, fixed_embedding_table(minute_size, d_model))  # minute: x[:,:,4]
            )
        self.T = len(self.cols_tables)

        # Fuse tables into one (R, d_model) table; R = 128 rows (full MXU K pass).
        sizes = [t.shape[0] for _, t in self.cols_tables]
        self.offsets = [int(sum(sizes[:i])) for i in range(self.T)]   # per-table row offsets
        total = sum(sizes)                                            # 76 (h) or 80 (t)
        self.R = max(128, _round_up(total, 8))
        fused = jnp.concatenate([t for _, t in self.cols_tables], axis=0)
        fused = jnp.pad(fused, ((0, self.R - total), (0, 0)))
        self.fused = fused.astype(self.table_dtype)                   # (R, d_model)

        # Lane-dense packing: k consecutive positions -> one 128-lane output row.
        if d_model < 128 and 128 % d_model == 0 and d_model >= 16:
            self.k = 128 // d_model
            # block-diagonal widened table (k*R, 128); extra zero MACs are hidden
            # behind the HBM write (v5e/v6e) and only apply for small d_model.
            self.w_wide = jnp.kron(jnp.eye(self.k, dtype=self.fused.dtype), self.fused)
        else:
            self.k = 1
            self.w_wide = None

    @staticmethod
    def _pick_tile(n_rows: int, d_out: int, out_bytes: int, k: int, w_bytes: int) -> int:
        # ~14 MiB budget: double-buffered out/idx blocks, mh/iota temps, resident table.
        budget = 14 * 1024 * 1024 - 2 * w_bytes
        budget = max(budget, 4 * 1024 * 1024)
        per_row = 2 * d_out * out_bytes          # out block, double-buffered
        per_row += 2 * 128 * 4                   # idx block (lane-padded to 128), double-buffered
        per_row += 2 * k * 128 * 4               # mh + iota temporaries
        tile = max(8, min(1024, (budget // per_row) // 8 * 8))
        # keep >= ~8 grid steps for v7x's two TensorCores when there is enough work
        tile = min(tile, max(256, _round_up(-(-n_rows // 8), 8)))
        if tile >= 256:
            tile = (tile // 128) * 128
        return tile if tile < n_rows else n_rows

    def __call__(self, x: jnp.ndarray, *, tile_rows: int | None = None) -> jnp.ndarray:
        B, L, F = x.shape
        N = B * L
        d_model, T, R = self.d_model, self.T, self.R

        # Global row indices into the fused table (clamped -> robust to bad inputs).
        idx = x.reshape(N, F).astype(jnp.int32)
        cols = []
        for (c, tbl), off in zip(self.cols_tables, self.offsets):
            cols.append(jnp.clip(idx[:, c], 0, tbl.shape[0] - 1) + off)
        idx_g = jnp.stack(cols, axis=1)                              # (N, T)

        # Lane-dense grouping (k positions per 128-lane output row) when possible.
        k = self.k if (self.k > 1 and N % self.k == 0) else 1
        if k > 1:
            idx_g = idx_g + (jnp.arange(N, dtype=jnp.int32) % k)[:, None] * R
            idx_g = idx_g.reshape(N // k, T * k)
            w = self.w_wide
        else:
            w = self.fused
        n_rows, n_cols = idx_g.shape
        d_out = w.shape[1]
        out_bytes = self.out_dtype.itemsize
        w_bytes = int(w.size) * w.dtype.itemsize

        if tile_rows is None:
            tile = self._pick_tile(n_rows, d_out, out_bytes, k, w_bytes)
        else:
            tile = max(8, _round_up(min(int(tile_rows), n_rows), 8))
        if tile >= n_rows:
            tile = n_rows

        # No N padding / no post-kernel slice: cdiv grid, last partial block masked.
        out = pl.pallas_call(
            _temporal_kernel,
            out_shape=jax.ShapeDtypeStruct((n_rows, d_out), self.out_dtype),
            grid=(pl.cdiv(n_rows, tile),),
            in_specs=[
                pl.BlockSpec((tile, n_cols), lambda i: (i, 0)),   # pre-offset indices
                pl.BlockSpec(w.shape, lambda i: (0, 0)),          # fused table (resident)
            ],
            out_specs=pl.BlockSpec((tile, d_out), lambda i: (i, 0)),
            compiler_params=pltpu.CompilerParams(
                dimension_semantics=("parallel",),
                vmem_limit_bytes=32 * 1024 * 1024,
            ),
        )(idx_g, w)

        # Row-major reshape back to (B, L, d_model) — free (no data movement).
        return out.reshape(B, L, d_model)


# ---------------------------------------------------------------------------
# Pure-JAX reference for validation
# ---------------------------------------------------------------------------
def temporal_embedding_ref(x, cols_tables):
    out = 0.0
    for col, tbl in cols_tables:
        out = out + jnp.take(tbl, x[:, :, col].astype(jnp.int32), axis=0)
    return out


if __name__ == "__main__":
    key = jax.random.PRNGKey(0)

    def make_x(k, B, L):
        ks = jax.random.split(k, 5)
        month = jax.random.randint(ks[0], (B, L), 0, 13)
        day = jax.random.randint(ks[1], (B, L), 0, 32)
        weekday = jax.random.randint(ks[2], (B, L), 0, 7)
        hour = jax.random.randint(ks[3], (B, L), 0, 24)
        minute = jax.random.randint(ks[4], (B, L), 0, 4)
        # features stacked on last axis: [month, day, weekday, hour, minute]
        return jnp.stack([month, day, weekday, hour, minute], axis=-1).astype(jnp.int32)

    k1, k2 = jax.random.split(key)

    # Config 1: d_model=32 (< 128) -> lane-dense k=4 packing, freq='t' (5 tables).
    x1 = make_x(k1, 2, 8)
    m1 = TemporalEmbeddingPallas(32, embed_type="fixed", freq="t")
    y1 = jax.block_until_ready(m1(x1))
    r1 = temporal_embedding_ref(x1, m1.cols_tables)
    assert y1.shape == (2, 8, 32)
    assert jnp.allclose(y1, r1, atol=1e-5, rtol=1e-5)

    # Config 2: d_model=128, freq='h', N=26 with tile_rows=8 -> exercises the
    # cdiv grid with a masked partial final block (no host-side pad/slice).
    x2 = make_x(k2, 2, 13)
    m2 = TemporalEmbeddingPallas(128, embed_type="fixed", freq="h")
    y2 = jax.block_until_ready(m2(x2, tile_rows=8))
    r2 = temporal_embedding_ref(x2, m2.cols_tables)
    assert y2.shape == (2, 13, 128)
    assert jnp.allclose(y2, r2, atol=1e-5, rtol=1e-5)
    # NOTE: with table_dtype/out_dtype = bfloat16 (recommended when the consumer
    # network is bf16), relax the tolerances above accordingly.

    print("KERNEL_OK")
</pallas_src>

<mosaic_0001>
module attributes {stable_mosaic.version = 11 : i64} {
  func.func @_temporal_kernel(%arg0: i32, %arg1: memref<4x20xi32, #tpu.memory_space<vmem>>, %arg2: memref<512x128xf32, #tpu.memory_space<vmem>>, %arg3: memref<4x128xf32, #tpu.memory_space<vmem>>) attributes {dimension_semantics = [#tpu.dimension_semantics<parallel>], iteration_bounds = array<i64: 1>, scalar_prefetch = 0 : i64, scratch_operands = 0 : i64, tpu.core_type = #tpu.core_type<tc>, window_params = [{transform_indices = @transform_0, window_bounds = array<i64: 4, 20>}, {pipeline_mode = #tpu.pipeline_mode<synchronous>, transform_indices = @transform_1, window_bounds = array<i64: 512, 128>}, {transform_indices = @transform_2, window_bounds = array<i64: 4, 128>}]} {
    %c0 = arith.constant 0 : index
    %c0_0 = arith.constant 0 : index
    %0 = vector.load %arg1[%c0, %c0_0] : memref<4x20xi32, #tpu.memory_space<vmem>>, vector<4x20xi32>
    %c0_1 = arith.constant 0 : index
    %c0_2 = arith.constant 0 : index
    %1 = vector.load %arg2[%c0_1, %c0_2] : memref<512x128xf32, #tpu.memory_space<vmem>>, vector<512x128xf32>
    %2 = tpu.iota {dimensions = array<i32: 1>} : vector<4x512xi32>
    %3 = vector.extract_strided_slice %0 {offsets = [0, 0], sizes = [4, 1], strides = [1, 1]} : vector<4x20xi32> to vector<4x1xi32>
    %4 = vector.shape_cast %3 : vector<4x1xi32> to vector<4xi32>
    %5 = vector.shape_cast %4 : vector<4xi32> to vector<4x1xi32>
    %6 = vector.broadcast %5 : vector<4x1xi32> to vector<4x512xi32>
    %7 = arith.cmpi eq, %2, %6 : vector<4x512xi32>
    %8 = vector.extract_strided_slice %0 {offsets = [0, 1], sizes = [4, 1], strides = [1, 1]} : vector<4x20xi32> to vector<4x1xi32>
    %9 = vector.shape_cast %8 : vector<4x1xi32> to vector<4xi32>
    %10 = vector.shape_cast %9 : vector<4xi32> to vector<4x1xi32>
    %11 = vector.broadcast %10 : vector<4x1xi32> to vector<4x512xi32>
    %12 = arith.cmpi eq, %2, %11 : vector<4x512xi32>
    %13 = arith.ori %7, %12 : vector<4x512xi1>
    %14 = vector.extract_strided_slice %0 {offsets = [0, 2], sizes = [4, 1], strides = [1, 1]} : vector<4x20xi32> to vector<4x1xi32>
    %15 = vector.shape_cast %14 : vector<4x1xi32> to vector<4xi32>
    %16 = vector.shape_cast %15 : vector<4xi32> to vector<4x1xi32>
    %17 = vector.broadcast %16 : vector<4x1xi32> to vector<4x512xi32>
    %18 = arith.cmpi eq, %2, %17 : vector<4x512xi32>
    %19 = arith.ori %13, %18 : vector<4x512xi1>
    %20 = vector.extract_strided_slice %0 {offsets = [0, 3], sizes = [4, 1], strides = [1, 1]} : vector<4x20xi32> to vector<4x1xi32>
    %21 = vector.shape_cast %20 : vector<4x1xi32> to vector<4xi32>
    %22 = vector.shape_cast %21 : vector<4xi32> to vector<4x1xi32>
    %23 = vector.broadcast %22 : vector<4x1xi32> to vector<4x512xi32>
    %24 = arith.cmpi eq, %2, %23 : vector<4x512xi32>
    %25 = arith.ori %19, %24 : vector<4x512xi1>
    %26 = vector.extract_strided_slice %0 {offsets = [0, 4], sizes = [4, 1], strides = [1, 1]} : vector<4x20xi32> to vector<4x1xi32>
    %27 = vector.shape_cast %26 : vector<4x1xi32> to vector<4xi32>
    %28 = vector.shape_cast %27 : vector<4xi32> to vector<4x1xi32>
    %29 = vector.broadcast %28 : vector<4x1xi32> to vector<4x512xi32>
    %30 = arith.cmpi eq, %2, %29 : vector<4x512xi32>
    %31 = arith.ori %25, %30 : vector<4x512xi1>
    %32 = vector.extract_strided_slice %0 {offsets = [0, 5], sizes = [4, 1], strides = [1, 1]} : vector<4x20xi32> to vector<4x1xi32>
    %33 = vector.shape_cast %32 : vector<4x1xi32> to vector<4xi32>
    %34 = vector.shape_cast %33 : vector<4xi32> to vector<4x1xi32>
    %35 = vector.broadcast %34 : vector<4x1xi32> to vector<4x512xi32>
    %36 = arith.cmpi eq, %2, %35 : vector<4x512xi32>
    %37 = arith.ori %31, %36 : vector<4x512xi1>
    %38 = vector.extract_strided_slice %0 {offsets = [0, 6], sizes = [4, 1], strides = [1, 1]} : vector<4x20xi32> to vector<4x1xi32>
    %39 = vector.shape_cast %38 : vector<4x1xi32> to vector<4xi32>
    %40 = vector.shape_cast %39 : vector<4xi32> to vector<4x1xi32>
    %41 = vector.broadcast %40 : vector<4x1xi32> to vector<4x512xi32>
    %42 = arith.cmpi eq, %2, %41 : vector<4x512xi32>
    %43 = arith.ori %37, %42 : vector<4x512xi1>
    %44 = vector.extract_strided_slice %0 {offsets = [0, 7], sizes = [4, 1], strides = [1, 1]} : vector<4x20xi32> to vector<4x1xi32>
    %45 = vector.shape_cast %44 : vector<4x1xi32> to vector<4xi32>
    %46 = vector.shape_cast %45 : vector<4xi32> to vector<4x1xi32>
    %47 = vector.broadcast %46 : vector<4x1xi32> to vector<4x512xi32>
    %48 = arith.cmpi eq, %2, %47 : vector<4x512xi32>
    %49 = arith.ori %43, %48 : vector<4x512xi1>
    %50 = vector.extract_strided_slice %0 {offsets = [0, 8], sizes = [4, 1], strides = [1, 1]} : vector<4x20xi32> to vector<4x1xi32>
    %51 = vector.shape_cast %50 : vector<4x1xi32> to vector<4xi32>
    %52 = vector.shape_cast %51 : vector<4xi32> to vector<4x1xi32>
    %53 = vector.broadcast %52 : vector<4x1xi32> to vector<4x512xi32>
    %54 = arith.cmpi eq, %2, %53 : vector<4x512xi32>
    %55 = arith.ori %49, %54 : vector<4x512xi1>
    %56 = vector.extract_strided_slice %0 {offsets = [0, 9], sizes = [4, 1], strides = [1, 1]} : vector<4x20xi32> to vector<4x1xi32>
    %57 = vector.shape_cast %56 : vector<4x1xi32> to vector<4xi32>
    %58 = vector.shape_cast %57 : vector<4xi32> to vector<4x1xi32>
    %59 = vector.broadcast %58 : vector<4x1xi32> to vector<4x512xi32>
    %60 = arith.cmpi eq, %2, %59 : vector<4x512xi32>
    %61 = arith.ori %55, %60 : vector<4x512xi1>
    %62 = vector.extract_strided_slice %0 {offsets = [0, 10], sizes = [4, 1], strides = [1, 1]} : vector<4x20xi32> to vector<4x1xi32>
    %63 = vector.shape_cast %62 : vector<4x1xi32> to vector<4xi32>
    %64 = vector.shape_cast %63 : vector<4xi32> to vector<4x1xi32>
    %65 = vector.broadcast %64 : vector<4x1xi32> to vector<4x512xi32>
    %66 = arith.cmpi eq, %2, %65 : vector<4x512xi32>
    %67 = arith.ori %61, %66 : vector<4x512xi1>
    %68 = vector.extract_strided_slice %0 {offsets = [0, 11], sizes = [4, 1], strides = [1, 1]} : vector<4x20xi32> to vector<4x1xi32>
    %69 = vector.shape_cast %68 : vector<4x1xi32> to vector<4xi32>
    %70 = vector.shape_cast %69 : vector<4xi32> to vector<4x1xi32>
    %71 = vector.broadcast %70 : vector<4x1xi32> to vector<4x512xi32>
    %72 = arith.cmpi eq, %2, %71 : vector<4x512xi32>
    %73 = arith.ori %67, %72 : vector<4x512xi1>
    %74 = vector.extract_strided_slice %0 {offsets = [0, 12], sizes = [4, 1], strides = [1, 1]} : vector<4x20xi32> to vector<4x1xi32>
    %75 = vector.shape_cast %74 : vector<4x1xi32> to vector<4xi32>
    %76 = vector.shape_cast %75 : vector<4xi32> to vector<4x1xi32>
    %77 = vector.broadcast %76 : vector<4x1xi32> to vector<4x512xi32>
    %78 = arith.cmpi eq, %2, %77 : vector<4x512xi32>
    %79 = arith.ori %73, %78 : vector<4x512xi1>
    %80 = vector.extract_strided_slice %0 {offsets = [0, 13], sizes = [4, 1], strides = [1, 1]} : vector<4x20xi32> to vector<4x1xi32>
    %81 = vector.shape_cast %80 : vector<4x1xi32> to vector<4xi32>
    %82 = vector.shape_cast %81 : vector<4xi32> to vector<4x1xi32>
    %83 = vector.broadcast %82 : vector<4x1xi32> to vector<4x512xi32>
    %84 = arith.cmpi eq, %2, %83 : vector<4x512xi32>
    %85 = arith.ori %79, %84 : vector<4x512xi1>
    %86 = vector.extract_strided_slice %0 {offsets = [0, 14], sizes = [4, 1], strides = [1, 1]} : vector<4x20xi32> to vector<4x1xi32>
    %87 = vector.shape_cast %86 : vector<4x1xi32> to vector<4xi32>
    %88 = vector.shape_cast %87 : vector<4xi32> to vector<4x1xi32>
    %89 = vector.broadcast %88 : vector<4x1xi32> to vector<4x512xi32>
    %90 = arith.cmpi eq, %2, %89 : vector<4x512xi32>
    %91 = arith.ori %85, %90 : vector<4x512xi1>
    %92 = vector.extract_strided_slice %0 {offsets = [0, 15], sizes = [4, 1], strides = [1, 1]} : vector<4x20xi32> to vector<4x1xi32>
    %93 = vector.shape_cast %92 : vector<4x1xi32> to vector<4xi32>
    %94 = vector.shape_cast %93 : vector<4xi32> to vector<4x1xi32>
    %95 = vector.broadcast %94 : vector<4x1xi32> to vector<4x512xi32>
    %96 = arith.cmpi eq, %2, %95 : vector<4x512xi32>
    %97 = arith.ori %91, %96 : vector<4x512xi1>
    %98 = vector.extract_strided_slice %0 {offsets = [0, 16], sizes = [4, 1], strides = [1, 1]} : vector<4x20xi32> to vector<4x1xi32>
    %99 = vector.shape_cast %98 : vector<4x1xi32> to vector<4xi32>
    %100 = vector.shape_cast %99 : vector<4xi32> to vector<4x1xi32>
    %101 = vector.broadcast %100 : vector<4x1xi32> to vector<4x512xi32>
    %102 = arith.cmpi eq, %2, %101 : vector<4x512xi32>
    %103 = arith.ori %97, %102 : vector<4x512xi1>
    %104 = vector.extract_strided_slice %0 {offsets = [0, 17], sizes = [4, 1], strides = [1, 1]} : vector<4x20xi32> to vector<4x1xi32>
    %105 = vector.shape_cast %104 : vector<4x1xi32> to vector<4xi32>
    %106 = vector.shape_cast %105 : vector<4xi32> to vector<4x1xi32>
    %107 = vector.broadcast %106 : vector<4x1xi32> to vector<4x512xi32>
    %108 = arith.cmpi eq, %2, %107 : vector<4x512xi32>
    %109 = arith.ori %103, %108 : vector<4x512xi1>
    %110 = vector.extract_strided_slice %0 {offsets = [0, 18], sizes = [4, 1], strides = [1, 1]} : vector<4x20xi32> to vector<4x1xi32>
    %111 = vector.shape_cast %110 : vector<4x1xi32> to vector<4xi32>
    %112 = vector.shape_cast %111 : vector<4xi32> to vector<4x1xi32>
    %113 = vector.broadcast %112 : vector<4x1xi32> to vector<4x512xi32>
    %114 = arith.cmpi eq, %2, %113 : vector<4x512xi32>
    %115 = arith.ori %109, %114 : vector<4x512xi1>
    %116 = vector.extract_strided_slice %0 {offsets = [0, 19], sizes = [4, 1], strides = [1, 1]} : vector<4x20xi32> to vector<4x1xi32>
    %117 = vector.shape_cast %116 : vector<4x1xi32> to vector<4xi32>
    %118 = vector.shape_cast %117 : vector<4xi32> to vector<4x1xi32>
    %119 = vector.broadcast %118 : vector<4x1xi32> to vector<4x512xi32>
    %120 = arith.cmpi eq, %2, %119 : vector<4x512xi32>
    %121 = arith.ori %115, %120 : vector<4x512xi1>
    %122 = arith.extui %121 : vector<4x512xi1> to vector<4x512xi32>
    %123 = arith.sitofp %122 : vector<4x512xi32> to vector<4x512xf32>
    %cst = arith.constant dense<0.000000e+00> : vector<4x128xf32>
    %124 = tpu.matmul %123, %1, %cst {dimension_numbers = #tpu.dot_dimension_numbers<[1], [0], [0], [1], [0, 0, 1, 1], [], []>} : vector<4x512xf32>, vector<512x128xf32>, vector<4x128xf32> -> vector<4x128xf32>
    %c0_3 = arith.constant 0 : index
    %c0_4 = arith.constant 0 : index
    %125 = vector.load %arg3[%c0_3, %c0_4] : memref<4x128xf32, #tpu.memory_space<vmem>>, vector<4x128xf32>
    tpu.vector_store %arg3[%c0_3, %c0_4], %124 {strides = array<i32>} : memref<4x128xf32, #tpu.memory_space<vmem>>, vector<4x128xf32>,
    return
  }
  func.func @transform_0(%arg0: i32) -> (i32, i32) {
    %c0_i32 = arith.constant 0 : i32
    %c0_i32_0 = arith.constant 0 : i32
    return %arg0, %c0_i32 : i32, i32
  }
  func.func @transform_1(%arg0: i32) -> (i32, i32) {
    %c0_i32 = arith.constant 0 : i32
    %c0_i32_0 = arith.constant 0 : i32
    %c0_i32_1 = arith.constant 0 : i32
    return %c0_i32, %c0_i32_0 : i32, i32
  }
  func.func @transform_2(%arg0: i32) -> (i32, i32) {
    %c0_i32 = arith.constant 0 : i32
    %c0_i32_0 = arith.constant 0 : i32
    return %arg0, %c0_i32 : i32, i32
  }
}

</mosaic_0001>

<llo_original>
// kernel: tpu_custom_call.1
$region0: #{tpu_custom_call.1}
  #allocation0 [shape = 'u32[]', space=smem, size = 0x4, offset = 0x4, fixed_abs, tag = 'smem constant byte address 0x4 - core index']
  #allocation1 [shape = 'u32[144,128]{1,0:T(1,128)}', space=vmem, size = 0x12000, scoped, tag = 'internal scratch']
  %s0 = inlined_call_operand.hbm [shape: s32[4,20], index: 0, kind: input, shape index: {}]
  %s1 = inlined_call_operand.hbm [shape: f32[512,128], index: 1, kind: input, shape index: {}]
  %s2 = inlined_call_operand.hbm [shape: f32[4,128], index: 2, kind: output, shape index: {}]
  %s3 = sld [smem:[#allocation0]]
  $region26: #{tpu_custom_call.1} parent=0
    _
  %s5 = ssub.s32 1, %s3
  %s6 = scalar_select 0, %s5, %s3
  $region1: #{tpu_custom_call.1} parent=0
    #allocation2 [shape = 'u8[2048]{0}', space=vmem, size = 0x800, scoped, tag = 'input window, operand 0, single buffered']
    #allocation3 [shape = 's32[1]{0}', space=sflag, size = 0x4, scoped, tag = 'scoped memory for tpu_custom_call.1']
    #allocation4 [shape = 's32[1]{0}', space=sflag, size = 0x4, scoped, tag = 'scoped memory for tpu_custom_call.1']
    #allocation5 [shape = 'u8[262144]{0}', space=vmem, size = 0x40000, scoped, tag = 'input window, operand 1, single buffered']
    #allocation6 [shape = 's32[1]{0}', space=sflag, size = 0x4, scoped, tag = 'scoped memory for tpu_custom_call.1']
    #allocation7 [shape = 'u8[2048]{0}', space=vmem, size = 0x800, scoped, tag = 'output window, operand 0, single buffered']
    %7 = vsyncpa [#allocation3], 0
    %8 = vsyncpa [#allocation6], 0
    %9 = vsyncpa [#allocation4], 0
    // Predicated region
    $region2: #{tpu_custom_call.1} parent=1 // pred_check
      _
    $region3: #{tpu_custom_call.1} parent=1 // pred_check_branch
      %11 = sbr.rel (0) target = $region5
    $region4: #{tpu_custom_call.1} parent=1 // pred_region
      %s13 = ssub.s32 64, 64
      %14 = vsyncadd [#allocation3], %s13
      %s16 = sshll.u32 [#allocation2], 4
      %s17 = int_to_ptr.vmem [resolvable:$true] %s16
      %19 = dma.hbm_to_vmem [thread:$0]  %s0, 64, %s17, [#allocation3]
    $region5: #{tpu_custom_call.1} parent=1 // pred_fallthru
      _
    // Predicated region
    $region6: #{tpu_custom_call.1} parent=1 // pred_check
      _
    $region7: #{tpu_custom_call.1} parent=1 // pred_check_branch
      %21 = sbr.rel (0) target = $region9
    $region8: #{tpu_custom_call.1} parent=1 // pred_region
      %s23 = ssub.s32 8192, 8192
      %24 = vsyncadd [#allocation6], %s23
      %s25 = sshll.u32 [#allocation5], 4
      %s26 = int_to_ptr.vmem [resolvable:$true] %s25
      %31 = dma.hbm_to_vmem [thread:$0]  %s1, 8192, %s26, [#allocation6], 128, 128, 8
    $region9: #{tpu_custom_call.1} parent=1 // pred_fallthru
      _
    // Predicated region
    $region10: #{tpu_custom_call.1} parent=1 // pred_check
      _
    $region11: #{tpu_custom_call.1} parent=1 // pred_check_branch
      %33 = sbr.rel (0) target = $region13
    $region12: #{tpu_custom_call.1} parent=1 // pred_region
      %34 = dma.done [#allocation3], 64
    $region13: #{tpu_custom_call.1} parent=1 // pred_fallthru
      _
    // Predicated region
    $region14: #{tpu_custom_call.1} parent=1 // pred_check
      _
    $region15: #{tpu_custom_call.1} parent=1 // pred_check_branch
      %36 = sbr.rel (0) target = $region17
    $region16: #{tpu_custom_call.1} parent=1 // pred_region
      %37 = dma.done [#allocation6], 8192
    $region17: #{tpu_custom_call.1} parent=1 // pred_fallthru
      _
    %v38 = vld [vmem:[#allocation2] sm:$0xf]
    %v39 = vld [vmem:[#allocation5] sm:$0xff]
    %v40 = vld [vmem:[#allocation5 + $0x8] sm:$0xff]
    %v41 = vld [vmem:[#allocation5 + $0x10] sm:$0xff]
    %v42 = vld [vmem:[#allocation5 + $0x18] sm:$0xff]
    %v43 = vld [vmem:[#allocation5 + $0x20] sm:$0xff]
    %v44 = vld [vmem:[#allocation5 + $0x28] sm:$0xff]
    %v45 = vld [vmem:[#allocation5 + $0x30] sm:$0xff]
    %v46 = vld [vmem:[#allocation5 + $0x38] sm:$0xff]
    %v47 = vld [vmem:[#allocation5 + $0x40] sm:$0xff]
    %v48 = vld [vmem:[#allocation5 + $0x48] sm:$0xff]
    %v49 = vld [vmem:[#allocation5 + $0x50] sm:$0xff]
    %v50 = vld [vmem:[#allocation5 + $0x58] sm:$0xff]
    %v51 = vld [vmem:[#allocation5 + $0x60] sm:$0xff]
    %v52 = vld [vmem:[#allocation5 + $0x68] sm:$0xff]
    %v53 = vld [vmem:[#allocation5 + $0x70] sm:$0xff]
    %v54 = vld [vmem:[#allocation5 + $0x78] sm:$0xff]
    %v55 = vld [vmem:[#allocation5 + $0x80] sm:$0xff]
    %v56 = vld [vmem:[#allocation5 + $0x88] sm:$0xff]
    %v57 = vld [vmem:[#allocation5 + $0x90] sm:$0xff]
    %v58 = vld [vmem:[#allocation5 + $0x98] sm:$0xff]
    %v59 = vld [vmem:[#allocation5 + $0xa0] sm:$0xff]
    %v60 = vld [vmem:[#allocation5 + $0xa8] sm:$0xff]
    %v61 = vld [vmem:[#allocation5 + $0xb0] sm:$0xff]
    %v62 = vld [vmem:[#allocation5 + $0xb8] sm:$0xff]
    %v63 = vld [vmem:[#allocation5 + $0xc0] sm:$0xff]
    %v64 = vld [vmem:[#allocation5 + $0xc8] sm:$0xff]
    %v65 = vld [vmem:[#allocation5 + $0xd0] sm:$0xff]
    %v66 = vld [vmem:[#allocation5 + $0xd8] sm:$0xff]
    %v67 = vld [vmem:[#allocation5 + $0xe0] sm:$0xff]
    %v68 = vld [vmem:[#allocation5 + $0xe8] sm:$0xff]
    %v69 = vld [vmem:[#allocation5 + $0xf0] sm:$0xff]
    %v70 = vld [vmem:[#allocation5 + $0xf8] sm:$0xff]
    %v71 = vld [vmem:[#allocation5 + $0x100] sm:$0xff]
    %v72 = vld [vmem:[#allocation5 + $0x108] sm:$0xff]
    %v73 = vld [vmem:[#allocation5 + $0x110] sm:$0xff]
    %v74 = vld [vmem:[#allocation5 + $0x118] sm:$0xff]
    %v75 = vld [vmem:[#allocation5 + $0x120] sm:$0xff]
    %v76 = vld [vmem:[#allocation5 + $0x128] sm:$0xff]
    %v77 = vld [vmem:[#allocation5 + $0x130] sm:$0xff]
    %v78 = vld [vmem:[#allocation5 + $0x138] sm:$0xff]
    %v79 = vld [vmem:[#allocation5 + $0x140] sm:$0xff]
    %v80 = vld [vmem:[#allocation5 + $0x148] sm:$0xff]
    %v81 = vld [vmem:[#allocation5 + $0x150] sm:$0xff]
    %v82 = vld [vmem:[#allocation5 + $0x158] sm:$0xff]
    %v83 = vld [vmem:[#allocation5 + $0x160] sm:$0xff]
    %v84 = vld [vmem:[#allocation5 + $0x168] sm:$0xff]
    %v85 = vld [vmem:[#allocation5 + $0x170] sm:$0xff]
    %v86 = vld [vmem:[#allocation5 + $0x178] sm:$0xff]
    %v87 = vld [vmem:[#allocation5 + $0x180] sm:$0xff]
    %v88 = vld [vmem:[#allocation5 + $0x188] sm:$0xff]
    %v89 = vld [vmem:[#allocation5 + $0x190] sm:$0xff]
    %v90 = vld [vmem:[#allocation5 + $0x198] sm:$0xff]
    %v91 = vld [vmem:[#allocation5 + $0x1a0] sm:$0xff]
    %v92 = vld [vmem:[#allocation5 + $0x1a8] sm:$0xff]
    %v93 = vld [vmem:[#allocation5 + $0x1b0] sm:$0xff]
    %v94 = vld [vmem:[#allocation5 + $0x1b8] sm:$0xff]
    %v95 = vld [vmem:[#allocation5 + $0x1c0] sm:$0xff]
    %v96 = vld [vmem:[#allocation5 + $0x1c8] sm:$0xff]
    %v97 = vld [vmem:[#allocation5 + $0x1d0] sm:$0xff]
    %v98 = vld [vmem:[#allocation5 + $0x1d8] sm:$0xff]
    %v99 = vld [vmem:[#allocation5 + $0x1e0] sm:$0xff]
    %v100 = vld [vmem:[#allocation5 + $0x1e8] sm:$0xff]
    %v101 = vld [vmem:[#allocation5 + $0x1f0] sm:$0xff]
    %v102 = vld [vmem:[#allocation5 + $0x1f8] sm:$0xff]
    %v103 = vlaneseq
    %v104 = vand.u32 %v103, 127
    %v105 = vadd.s32 %v104, 128
    %v106 = vadd.s32 %v104, 256
    %v107 = vadd.s32 %v104, 384
    %108 = vset.pattern.permute.xlu0 0
    %109 = vperm.xlu0 %108, %v38
    %v110 = vpop.permute.xlu0 %109
    %vm111 = vcmp.eq.s32.totalorder %v104, %v110
    %vm112 = vcmp.eq.s32.totalorder %v105, %v110
    %vm113 = vcmp.eq.s32.totalorder %v106, %v110
    %vm114 = vcmp.eq.s32.totalorder %v107, %v110
    %115 = vset.pattern.permute.xlu0 1
    %116 = vperm.xlu0 %115, %v38
    %v117 = vpop.permute.xlu0 %116
    %vm118 = vcmp.eq.s32.totalorder %v104, %v117
    %vm119 = vcmp.eq.s32.totalorder %v105, %v117
    %vm120 = vcmp.eq.s32.totalorder %v106, %v117
    %vm121 = vcmp.eq.s32.totalorder %v107, %v117
    %vm122 = vmor %vm111, %vm118
    %vm123 = vmor %vm112, %vm119
    %vm124 = vmor %vm113, %vm120
    %vm125 = vmor %vm114, %vm121
    %126 = vset.pattern.permute.xlu0 2
    %127 = vperm.xlu0 %126, %v38
    %v128 = vpop.permute.xlu0 %127
    %vm129 = vcmp.eq.s32.totalorder %v104, %v128
    %vm130 = vcmp.eq.s32.totalorder %v105, %v128
    %vm131 = vcmp.eq.s32.totalorder %v106, %v128
    %vm132 = vcmp.eq.s32.totalorder %v107, %v128
    %vm133 = vmor %vm122, %vm129
    %vm134 = vmor %vm123, %vm130
    %vm135 = vmor %vm124, %vm131
    %vm136 = vmor %vm125, %vm132
    %137 = vset.pattern.permute.xlu0 3
    %138 = vperm.xlu0 %137, %v38
    %v139 = vpop.permute.xlu0 %138
    %vm140 = vcmp.eq.s32.totalorder %v104, %v139
    %vm141 = vcmp.eq.s32.totalorder %v105, %v139
    %vm142 = vcmp.eq.s32.totalorder %v106, %v139
    %vm143 = vcmp.eq.s32.totalorder %v107, %v139
    %vm144 = vmor %vm133, %vm140
    %vm145 = vmor %vm134, %vm141
    %vm146 = vmor %vm135, %vm142
    %vm147 = vmor %vm136, %vm143
    %148 = vset.pattern.permute.xlu0 4
    %149 = vperm.xlu0 %148, %v38
    %v150 = vpop.permute.xlu0 %149
    %vm151 = vcmp.eq.s32.totalorder %v104, %v150
    %vm152 = vcmp.eq.s32.totalorder %v105, %v150
    %vm153 = vcmp.eq.s32.totalorder %v106, %v150
    %vm154 = vcmp.eq.s32.totalorder %v107, %v150
    %vm155 = vmor %vm144, %vm151
    %vm156 = vmor %vm145, %vm152
    %vm157 = vmor %vm146, %vm153
    %vm158 = vmor %vm147, %vm154
    %159 = vset.pattern.permute.xlu0 5
    %160 = vperm.xlu0 %159, %v38
    %v161 = vpop.permute.xlu0 %160
    %vm162 = vcmp.eq.s32.totalorder %v104, %v161
    %vm163 = vcmp.eq.s32.totalorder %v105, %v161
    %vm164 = vcmp.eq.s32.totalorder %v106, %v161
    %vm165 = vcmp.eq.s32.totalorder %v107, %v161
    %vm166 = vmor %vm155, %vm162
    %vm167 = vmor %vm156, %vm163
    %vm168 = vmor %vm157, %vm164
    %vm169 = vmor %vm158, %vm165
    %170 = vset.pattern.permute.xlu0 6
    %171 = vperm.xlu0 %170, %v38
    %v172 = vpop.permute.xlu0 %171
    %vm173 = vcmp.eq.s32.totalorder %v104, %v172
    %vm174 = vcmp.eq.s32.totalorder %v105, %v172
    %vm175 = vcmp.eq.s32.totalorder %v106, %v172
    %vm176 = vcmp.eq.s32.totalorder %v107, %v172
    %vm177 = vmor %vm166, %vm173
    %vm178 = vmor %vm167, %vm174
    %vm179 = vmor %vm168, %vm175
    %vm180 = vmor %vm169, %vm176
    %181 = vset.pattern.permute.xlu0 7
    %182 = vperm.xlu0 %181, %v38
    %v183 = vpop.permute.xlu0 %182
    %vm184 = vcmp.eq.s32.totalorder %v104, %v183
    %vm185 = vcmp.eq.s32.totalorder %v105, %v183
    %vm186 = vcmp.eq.s32.totalorder %v106, %v183
    %vm187 = vcmp.eq.s32.totalorder %v107, %v183
    %vm188 = vmor %vm177, %vm184
    %vm189 = vmor %vm178, %vm185
    %vm190 = vmor %vm179, %vm186
    %vm191 = vmor %vm180, %vm187
    %192 = vset.pattern.permute.xlu0 8
    %193 = vperm.xlu0 %192, %v38
    %v194 = vpop.permute.xlu0 %193
    %vm195 = vcmp.eq.s32.totalorder %v104, %v194
    %vm196 = vcmp.eq.s32.totalorder %v105, %v194
    %vm197 = vcmp.eq.s32.totalorder %v106, %v194
    %vm198 = vcmp.eq.s32.totalorder %v107, %v194
    %vm199 = vmor %vm188, %vm195
    %vm200 = vmor %vm189, %vm196
    %vm201 = vmor %vm190, %vm197
    %vm202 = vmor %vm191, %vm198
    %203 = vset.pattern.permute.xlu0 9
    %204 = vperm.xlu0 %203, %v38
    %v205 = vpop.permute.xlu0 %204
    %vm206 = vcmp.eq.s32.totalorder %v104, %v205
    %vm207 = vcmp.eq.s32.totalorder %v105, %v205
    %vm208 = vcmp.eq.s32.totalorder %v106, %v205
    %vm209 = vcmp.eq.s32.totalorder %v107, %v205
    %vm210 = vmor %vm199, %vm206
    %vm211 = vmor %vm200, %vm207
    %vm212 = vmor %vm201, %vm208
    %vm213 = vmor %vm202, %vm209
    %214 = vset.pattern.permute.xlu0 10
    %215 = vperm.xlu0 %214, %v38
    %v216 = vpop.permute.xlu0 %215
    %vm217 = vcmp.eq.s32.totalorder %v104, %v216
    %vm218 = vcmp.eq.s32.totalorder %v105, %v216
    %vm219 = vcmp.eq.s32.totalorder %v106, %v216
    %vm220 = vcmp.eq.s32.totalorder %v107, %v216
    %vm221 = vmor %vm210, %vm217
    %vm222 = vmor %vm211, %vm218
    %vm223 = vmor %vm212, %vm219
    %vm224 = vmor %vm213, %vm220
    %225 = vset.pattern.permute.xlu0 11
    %226 = vperm.xlu0 %225, %v38
    %v227 = vpop.permute.xlu0 %226
    %vm228 = vcmp.eq.s32.totalorder %v104, %v227
    %vm229 = vcmp.eq.s32.totalorder %v105, %v227
    %vm230 = vcmp.eq.s32.totalorder %v106, %v227
    %vm231 = vcmp.eq.s32.totalorder %v107, %v227
    %vm232 = vmor %vm221, %vm228
    %vm233 = vmor %vm222, %vm229
    %vm234 = vmor %vm223, %vm230
    %vm235 = vmor %vm224, %vm231
    %236 = vset.pattern.permute.xlu0 12
    %237 = vperm.xlu0 %236, %v38
    %v238 = vpop.permute.xlu0 %237
    %vm239 = vcmp.eq.s32.totalorder %v104, %v238
    %vm240 = vcmp.eq.s32.totalorder %v105, %v238
    %vm241 = vcmp.eq.s32.totalorder %v106, %v238
    %vm242 = vcmp.eq.s32.totalorder %v107, %v238
    %vm243 = vmor %vm232, %vm239
    %vm244 = vmor %vm233, %vm240
    %vm245 = vmor %vm234, %vm241
    %vm246 = vmor %vm235, %vm242
    %247 = vset.pattern.permute.xlu0 13
    %248 = vperm.xlu0 %247, %v38
    %v249 = vpop.permute.xlu0 %248
    %vm250 = vcmp.eq.s32.totalorder %v104, %v249
    %vm251 = vcmp.eq.s32.totalorder %v105, %v249
    %vm252 = vcmp.eq.s32.totalorder %v106, %v249
    %vm253 = vcmp.eq.s32.totalorder %v107, %v249
    %vm254 = vmor %vm243, %vm250
    %vm255 = vmor %vm244, %vm251
    %vm256 = vmor %vm245, %vm252
    %vm257 = vmor %vm246, %vm253
    %258 = vset.pattern.permute.xlu0 14
    %259 = vperm.xlu0 %258, %v38
    %v260 = vpop.permute.xlu0 %259
    %vm261 = vcmp.eq.s32.totalorder %v104, %v260
    %vm262 = vcmp.eq.s32.totalorder %v105, %v260
    %vm263 = vcmp.eq.s32.totalorder %v106, %v260
    %vm264 = vcmp.eq.s32.totalorder %v107, %v260
    %vm265 = vmor %vm254, %vm261
    %vm266 = vmor %vm255, %vm262
    %vm267 = vmor %vm256, %vm263
    %vm268 = vmor %vm257, %vm264
    %269 = vset.pattern.permute.xlu0 15
    %270 = vperm.xlu0 %269, %v38
    %v271 = vpop.permute.xlu0 %270
    %vm272 = vcmp.eq.s32.totalorder %v104, %v271
    %vm273 = vcmp.eq.s32.totalorder %v105, %v271
    %vm274 = vcmp.eq.s32.totalorder %v106, %v271
    %vm275 = vcmp.eq.s32.totalorder %v107, %v271
    %vm276 = vmor %vm265, %vm272
    %vm277 = vmor %vm266, %vm273
    %vm278 = vmor %vm267, %vm274
    %vm279 = vmor %vm268, %vm275
    %280 = vset.pattern.permute.xlu0 16
    %281 = vperm.xlu0 %280, %v38
    %v282 = vpop.permute.xlu0 %281
    %vm283 = vcmp.eq.s32.totalorder %v104, %v282
    %vm284 = vcmp.eq.s32.totalorder %v105, %v282
    %vm285 = vcmp.eq.s32.totalorder %v106, %v282
    %vm286 = vcmp.eq.s32.totalorder %v107, %v282
    %vm287 = vmor %vm276, %vm283
    %vm288 = vmor %vm277, %vm284
    %vm289 = vmor %vm278, %vm285
    %vm290 = vmor %vm279, %vm286
    %291 = vset.pattern.permute.xlu0 17
    %292 = vperm.xlu0 %291, %v38
    %v293 = vpop.permute.xlu0 %292
    %vm294 = vcmp.eq.s32.totalorder %v104, %v293
    %vm295 = vcmp.eq.s32.totalorder %v105, %v293
    %vm296 = vcmp.eq.s32.totalorder %v106, %v293
    %vm297 = vcmp.eq.s32.totalorder %v107, %v293
    %vm298 = vmor %vm287, %vm294
    %vm299 = vmor %vm288, %vm295
    %vm300 = vmor %vm289, %vm296
    %vm301 = vmor %vm290, %vm297
    %302 = vset.pattern.permute.xlu0 18
    %303 = vperm.xlu0 %302, %v38
    %v304 = vpop.permute.xlu0 %303
    %vm305 = vcmp.eq.s32.totalorder %v104, %v304
    %vm306 = vcmp.eq.s32.totalorder %v105, %v304
    %vm307 = vcmp.eq.s32.totalorder %v106, %v304
    %vm308 = vcmp.eq.s32.totalorder %v107, %v304
    %vm309 = vmor %vm298, %vm305
    %vm310 = vmor %vm299, %vm306
    %vm311 = vmor %vm300, %vm307
    %vm312 = vmor %vm301, %vm308
    %313 = vset.pattern.permute.xlu0 19
    %314 = vperm.xlu0 %313, %v38
    %v315 = vpop.permute.xlu0 %314
    %vm316 = vcmp.eq.s32.totalorder %v104, %v315
    %vm317 = vcmp.eq.s32.totalorder %v105, %v315
    %vm318 = vcmp.eq.s32.totalorder %v106, %v315
    %vm319 = vcmp.eq.s32.totalorder %v107, %v315
    %vm320 = vmor %vm309, %vm316
    %vm321 = vmor %vm310, %vm317
    %vm322 = vmor %vm311, %vm318
    %vm323 = vmor %vm312, %vm319
    %v324 = vsel %vm320, 1, 0
    %v325 = vsel %vm321, 1, 0
    %v326 = vsel %vm322, 1, 0
    %v327 = vsel %vm323, 1, 0
    %v328 = vcvt.s32.f32 %v324
    %v329 = vcvt.s32.f32 %v325
    %v330 = vcvt.s32.f32 %v326
    %v331 = vcvt.s32.f32 %v327
    %332 = vmatprep.subr.mxu0 0.0
    %333 = vmatpush1.msra.mxu0 %v39
    %334 = vmatprep.subr.mxu0 0.0
    %335 = vmatpush1.msra.mxu0 %v40
    %336 = vmatprep.subr.mxu0 0.0
    %337 = vmatpush1.msra.mxu0 %v41
    %338 = vmatprep.subr.mxu0 0.0
    %339 = vmatpush1.msra.mxu0 %v42
    %340 = vmatprep.subr.mxu0 0.0
    %341 = vmatpush1.msra.mxu0 %v43
    %342 = vmatprep.subr.mxu0 0.0
    %343 = vmatpush1.msra.mxu0 %v44
    %344 = vmatprep.subr.mxu0 0.0
    %345 = vmatpush1.msra.mxu0 %v45
    %346 = vmatprep.subr.mxu0 0.0
    %347 = vmatpush1.msra.mxu0 %v46
    %348 = vmatprep.subr.mxu0 0.0
    %349 = vmatpush1.msra.mxu0 %v47
    %350 = vmatprep.subr.mxu0 0.0
    %351 = vmatpush1.msra.mxu0 %v48
    %352 = vmatprep.subr.mxu0 0.0
    %353 = vmatpush1.msra.mxu0 %v49
    %354 = vmatprep.subr.mxu0 0.0
    %355 = vmatpush1.msra.mxu0 %v50
    %356 = vmatprep.subr.mxu0 0.0
    %357 = vmatpush1.msra.mxu0 %v51
    %358 = vmatprep.subr.mxu0 0.0
    %359 = vmatpush1.msra.mxu0 %v52
    %360 = vmatprep.subr.mxu0 0.0
    %361 = vmatpush1.msra.mxu0 %v53
    %362 = vmatprep.subr.mxu0 0.0
    %363 = vmatpush1.msra.mxu0 %v54
    %364 = vmatprep.subr.mxu0 0.0
    %365 = vmatpush1.msra.mxu0 %v55
    %366 = vmatprep.subr.mxu0 0.0
    %367 = vmatpush1.msra.mxu0 %v56
    %368 = vmatprep.subr.mxu0 0.0
    %369 = vmatpush1.msra.mxu0 %v57
    %370 = vmatprep.subr.mxu0 0.0
    %371 = vmatpush1.msra.mxu0 %v58
    %372 = vmatprep.subr.mxu0 0.0
    %373 = vmatpush1.msra.mxu0 %v59
    %374 = vmatprep.subr.mxu0 0.0
    %375 = vmatpush1.msra.mxu0 %v60
    %376 = vmatprep.subr.mxu0 0.0
    %377 = vmatpush1.msra.mxu0 %v61
    %378 = vmatprep.subr.mxu0 0.0
    %379 = vmatpush1.msra.mxu0 %v62
    %380 = vmatprep.subr.mxu0 0.0
    %381 = vmatpush1.msra.mxu0 %v63
    %382 = vmatprep.subr.mxu0 0.0
    %383 = vmatpush1.msra.mxu0 %v64
    %384 = vmatprep.subr.mxu0 0.0
    %385 = vmatpush1.msra.mxu0 %v65
    %386 = vmatprep.subr.mxu0 0.0
    %387 = vmatpush1.msra.mxu0 %v66
    %388 = vmatprep.subr.mxu0 0.0
    %389 = vmatpush1.msra.mxu0 %v67
    %390 = vmatprep.subr.mxu0 0.0
    %391 = vmatpush1.msra.mxu0 %v68
    %392 = vmatprep.subr.mxu0 0.0
    %393 = vmatpush1.msra.mxu0 %v69
    %394 = vmatprep.subr.mxu0 0.0
    %395 = vmatpush1.msra.mxu0 %v70
    %396 = vmatprep.mubr.f32.mxu0 %v329
    %397 = vmatmul.mubr.f32.gmra.mrb[0].mxu0 %v328
    %v398 = vpop.f32.mrb[0].mxu0
    %v399 = vadd.f32 0.0, %v398
    %v400 = vpop.f32.mrb[0].mxu0
    %401 = vdwg.mxu0
    %402 = vmatprep.subr.mxu0 0.0
    %403 = vmatpush1.msra.mxu0 %v71
    %404 = vmatprep.subr.mxu0 0.0
    %405 = vmatpush1.msra.mxu0 %v72
    %406 = vmatprep.subr.mxu0 0.0
    %407 = vmatpush1.msra.mxu0 %v73
    %408 = vmatprep.subr.mxu0 0.0
    %409 = vmatpush1.msra.mxu0 %v74
    %410 = vmatprep.subr.mxu0 0.0
    %411 = vmatpush1.msra.mxu0 %v75
    %412 = vmatprep.subr.mxu0 0.0
    %413 = vmatpush1.msra.mxu0 %v76
    %414 = vmatprep.subr.mxu0 0.0
    %415 = vmatpush1.msra.mxu0 %v77
    %416 = vmatprep.subr.mxu0 0.0
    %417 = vmatpush1.msra.mxu0 %v78
    %418 = vmatprep.subr.mxu0 0.0
    %419 = vmatpush1.msra.mxu0 %v79
    %420 = vmatprep.subr.mxu0 0.0
    %421 = vmatpush1.msra.mxu0 %v80
    %422 = vmatprep.subr.mxu0 0.0
    %423 = vmatpush1.msra.mxu0 %v81
    %424 = vmatprep.subr.mxu0 0.0
    %425 = vmatpush1.msra.mxu0 %v82
    %426 = vmatprep.subr.mxu0 0.0
    %427 = vmatpush1.msra.mxu0 %v83
    %428 = vmatprep.subr.mxu0 0.0
    %429 = vmatpush1.msra.mxu0 %v84
    %430 = vmatprep.subr.mxu0 0.0
    %431 = vmatpush1.msra.mxu0 %v85
    %432 = vmatprep.subr.mxu0 0.0
    %433 = vmatpush1.msra.mxu0 %v86
    %434 = vmatprep.subr.mxu0 0.0
    %435 = vmatpush1.msra.mxu0 %v87
    %436 = vmatprep.subr.mxu0 0.0
    %437 = vmatpush1.msra.mxu0 %v88
    %438 = vmatprep.subr.mxu0 0.0
    %439 = vmatpush1.msra.mxu0 %v89
    %440 = vmatprep.subr.mxu0 0.0
    %441 = vmatpush1.msra.mxu0 %v90
    %442 = vmatprep.subr.mxu0 0.0
    %443 = vmatpush1.msra.mxu0 %v91
    %444 = vmatprep.subr.mxu0 0.0
    %445 = vmatpush1.msra.mxu0 %v92
    %446 = vmatprep.subr.mxu0 0.0
    %447 = vmatpush1.msra.mxu0 %v93
    %448 = vmatprep.subr.mxu0 0.0
    %449 = vmatpush1.msra.mxu0 %v94
    %450 = vmatprep.subr.mxu0 0.0
    %451 = vmatpush1.msra.mxu0 %v95
    %452 = vmatprep.subr.mxu0 0.0
    %453 = vmatpush1.msra.mxu0 %v96
    %454 = vmatprep.subr.mxu0 0.0
    %455 = vmatpush1.msra.mxu0 %v97
    %456 = vmatprep.subr.mxu0 0.0
    %457 = vmatpush1.msra.mxu0 %v98
    %458 = vmatprep.subr.mxu0 0.0
    %459 = vmatpush1.msra.mxu0 %v99
    %460 = vmatprep.subr.mxu0 0.0
    %461 = vmatpush1.msra.mxu0 %v100
    %462 = vmatprep.subr.mxu0 0.0
    %463 = vmatpush1.msra.mxu0 %v101
    %464 = vmatprep.subr.mxu0 0.0
    %465 = vmatpush1.msra.mxu0 %v102
    %466 = vmatprep.mubr.f32.mxu0 %v331
    %467 = vmatmul.mubr.f32.gmra.mrb[0].mxu0 %v330
    %v468 = vpop.f32.mrb[0].mxu0
    %v469 = vadd.f32 %v399, %v468
    %v470 = vpop.f32.mrb[0].mxu0
    %471 = vdwg.mxu0
    %472 = vst [vmem:[#allocation7] sm:$0xf] %v469
    // Predicated region
    $region18: #{tpu_custom_call.1} parent=1 // pred_check
      _
    $region19: #{tpu_custom_call.1} parent=1 // pred_check_branch
      %474 = sbr.rel (0) target = $region21
    $region20: #{tpu_custom_call.1} parent=1 // pred_region
      %s476 = ssub.s32 64, 64
      %477 = vsyncadd [#allocation4], %s476
      %s479 = sshll.u32 [#allocation7], 4
      %s480 = int_to_ptr.vmem [resolvable:$true] %s479
      %482 = dma.vmem_to_hbm [thread:$0]  %s480, 64, %s2, [#allocation4]
    $region21: #{tpu_custom_call.1} parent=1 // pred_fallthru
      _
    // Predicated region
    $region22: #{tpu_custom_call.1} parent=1 // pred_check
      _
    $region23: #{tpu_custom_call.1} parent=1 // pred_check_branch
      %484 = sbr.rel (0) target = $region25
    $region24: #{tpu_custom_call.1} parent=1 // pred_region
      %485 = dma.done [#allocation4], 64
    $region25: #{tpu_custom_call.1} parent=1 // pred_fallthru
      _
    %486 = vsyncpa [#allocation3], 1
    %487 = vsyncpa [#allocation6], 1
    %488 = vsyncpa [#allocation4], 1

</llo_original>
